<compile_context>
chip_gen: v7x
topology: tpu7x:2x2x1
jax: 0.10.0
libtpu: 0.0.40
codegen_flags: <defaults>
</compile_context>

<pallas_src>
import functools

import jax
import jax.numpy as jnp
from jax.experimental import pallas as pl
from jax.experimental.pallas import tpu as pltpu

_LANES = 128
_ACC_ROWS = 64          # resident accumulator rows per split (8 vregs)


def _default_tile_config():
    """(block_rows, num_splits) tuned per TPU generation."""
    try:
        kind = jax.devices()[0].device_kind.lower()
    except Exception:  # pragma: no cover - CPU/interpret fallback
        kind = ""
    if "v7" in kind:
        return 4096, 2          # 2 TensorCores -> shard the reduction
    if "v6" in kind:
        return 4096, 1
    return 2048, 1              # v5e (16 MiB scoped-VMEM default) & unknown


def _lossfun_single_kernel(out_ref, y_ref, loss_ref):
    ov = out_ref[...].astype(jnp.float32)
    yv = y_ref[...].astype(jnp.float32)
    loss_ref[0, 0] = jnp.sum(ov * jnp.log(yv))


def _lossfun_tiled_kernel(out_ref, y_ref, acc_ref, *, rows):
    s = pl.program_id(0)                    # split (parallel axis)
    t = pl.program_id(1)                    # row-tile within split (reduction)
    tiles_per_split = pl.num_programs(1)
    block_rows = out_ref.shape[0]
    groups = block_rows // _ACC_ROWS

    @pl.when(t == 0)
    def _():
        acc_ref[...] = jnp.zeros_like(acc_ref)

    # Global row offset of this tile (unclamped; the index_map clamps the DMA
    # separately, so over-covered tiles just re-read the last block and are
    # fully masked out in the edge path below).
    row0 = (s * tiles_per_split + t) * block_rows
    needs_mask = (row0 + block_rows) > rows

    @pl.when(jnp.logical_not(needs_mask))
    def _interior():
        # Fast path for fully-in-range tiles: no iota / compare / select work.
        prod = (out_ref[...].astype(jnp.float32)
                * jnp.log(y_ref[...].astype(jnp.float32)))
        acc_ref[...] += jnp.sum(prod.reshape(groups, _ACC_ROWS, _LANES), axis=0)

    @pl.when(needs_mask)
    def _edge():
        # Mask BEFORE the log: out -> 0, y -> 1  =>  masked contribution is
        # exactly 0 and garbage rows in partial tiles never produce NaN/Inf.
        local_row = jax.lax.broadcasted_iota(jnp.int32, (block_rows, _LANES), 0)
        valid = (row0 + local_row) < rows
        ov = jnp.where(valid, out_ref[...].astype(jnp.float32), 0.0)
        yv = jnp.where(valid, y_ref[...].astype(jnp.float32), 1.0)
        prod = ov * jnp.log(yv)
        acc_ref[...] += jnp.sum(prod.reshape(groups, _ACC_ROWS, _LANES), axis=0)


def lossfun(out, y, *, block_rows=None, num_splits=None):
    """Pallas equivalent of: loss = torch.sum(out * torch.log(y)) (scalar f32)."""
    assert out.shape == y.shape
    auto_rows, auto_splits = _default_tile_config()
    if block_rows is None:
        block_rows = auto_rows
    if num_splits is None:
        num_splits = auto_splits
    assert block_rows % _ACC_ROWS == 0

    n = out.size
    out_flat = out.reshape(-1)
    y_flat = y.reshape(-1)

    rows = n // _LANES
    n_main = rows * _LANES

    # Ragged tail (< 128 elements): plain XLA reduce -- avoids the full-array
    # jnp.pad copy (an extra HBM read+write of both inputs).
    tail = jnp.float32(0.0)
    if n_main < n:
        tail = jnp.sum(out_flat[n_main:].astype(jnp.float32)
                       * jnp.log(y_flat[n_main:].astype(jnp.float32)))
    if rows == 0:
        return tail

    out2d = out_flat[:n_main].reshape(rows, _LANES)
    y2d = y_flat[:n_main].reshape(rows, _LANES)

    cost = pl.CostEstimate(
        flops=2 * n_main,
        transcendentals=n_main,
        bytes_accessed=n_main * (out.dtype.itemsize + y.dtype.itemsize))

    if rows <= block_rows:
        # Tiny input: one block covering the whole slab, single reduction.
        loss = pl.pallas_call(
            _lossfun_single_kernel,
            out_shape=jax.ShapeDtypeStruct((1, 1), jnp.float32),
            grid_spec=pltpu.PrefetchScalarGridSpec(
                num_scalar_prefetch=0,
                grid=(1,),
                in_specs=[
                    pl.BlockSpec((rows, _LANES), lambda i: (0, 0)),
                    pl.BlockSpec((rows, _LANES), lambda i: (0, 0)),
                ],
                out_specs=pl.BlockSpec((1, 1), lambda i: (0, 0),
                                       memory_space=pltpu.SMEM),
            ),
            compiler_params=pltpu.CompilerParams(
                dimension_semantics=("arbitrary",)),
            cost_estimate=cost,
        )(out2d, y2d)
        return loss[0, 0] + tail

    n_row_blocks = pl.cdiv(rows, block_rows)
    num_splits = max(1, min(num_splits, n_row_blocks))
    tiles_per_split = pl.cdiv(n_row_blocks, num_splits)
    last_block = n_row_blocks - 1

    def in_map(s, t):
        # Clamp so an over-covering tile still issues an in-bounds DMA; its
        # contribution is masked to 0 inside the kernel.
        return (jnp.minimum(s * tiles_per_split + t, last_block), 0)

    # Double-buffered inputs (2 x 2 x block) plus headroom for elementwise
    # temporaries; explicit so large tiles never hit v5e's 16 MiB scoped default.
    block_bytes = block_rows * _LANES * 4
    vmem_limit = min(max(16 << 20, 8 * block_bytes + (2 << 20)), 64 << 20)

    partials = pl.pallas_call(
        functools.partial(_lossfun_tiled_kernel, rows=rows),
        out_shape=jax.ShapeDtypeStruct((num_splits * _ACC_ROWS, _LANES),
                                       jnp.float32),
        grid_spec=pltpu.PrefetchScalarGridSpec(
            num_scalar_prefetch=0,
            grid=(num_splits, tiles_per_split),
            in_specs=[
                pl.BlockSpec((block_rows, _LANES), in_map),
                pl.BlockSpec((block_rows, _LANES), in_map),
            ],
            # One resident (64, 128) accumulator block per split.
            out_specs=pl.BlockSpec((_ACC_ROWS, _LANES), lambda s, t: (s, 0)),
        ),
        compiler_params=pltpu.CompilerParams(
            dimension_semantics=("parallel", "arbitrary"),
            vmem_limit_bytes=vmem_limit),
        cost_estimate=cost,
    )(out2d, y2d)
    # Tiny final reduction (num_splits * 64 * 128 f32) done by XLA.
    return jnp.sum(partials) + tail


if __name__ == "__main__":
    key = jax.random.PRNGKey(0)

    def check(shape, k, **kw):
        k1, k2 = jax.random.split(k)
        out = jax.random.normal(k1, shape, dtype=jnp.float32)
        y = jax.random.uniform(k2, shape, dtype=jnp.float32,
                               minval=0.1, maxval=2.0)
        loss = lossfun(out, y, **kw)
        jax.block_until_ready(loss)
        terms = out.astype(jnp.float32) * jnp.log(y.astype(jnp.float32))
        ref = jnp.sum(terms)
        tol = 3e-6 * jnp.sum(jnp.abs(terms)) + 1e-3
        assert jnp.abs(loss - ref) <= tol, (shape, float(loss), float(ref))

    # Primary example shape (tiny: single-block path, default config).
    key, k = jax.random.split(key)
    check((2, 4, 16, 16), k)
    # Tiled path, exact tile multiple (interior fast path only), 1 split.
    key, k = jax.random.split(key)
    check((8, 8, 64, 64), k, block_rows=256, num_splits=1)
    # Tiled path with a 2-way split (exercises the parallel axis).
    key, k = jax.random.split(key)
    check((8, 8, 64, 64), k, block_rows=256, num_splits=2)
    # Ragged size: XLA tail sum + partial last tile + clamped over-cover tile.
    key, k = jax.random.split(key)
    check((1, 140003), k, block_rows=256, num_splits=2)
    # Larger input through the default, generation-tuned configuration.
    key, k = jax.random.split(key)
    check((32, 8, 64, 64), k)

    print("KERNEL_OK")
</pallas_src>

<mosaic_0001>
module attributes {stable_mosaic.version = 11 : i64} {
  func.func @_lossfun_single_kernel(%arg0: i32, %arg1: memref<16x128xf32, #tpu.memory_space<vmem>>, %arg2: memref<16x128xf32, #tpu.memory_space<vmem>>, %arg3: memref<1x1xf32, #tpu.memory_space<smem>>) attributes {dimension_semantics = [#tpu.dimension_semantics<arbitrary>], iteration_bounds = array<i64: 1>, scalar_prefetch = 0 : i64, scratch_operands = 0 : i64, tpu.core_type = #tpu.core_type<tc>, window_params = [{pipeline_mode = #tpu.pipeline_mode<synchronous>, transform_indices = @transform_0, window_bounds = array<i64: 16, 128>}, {pipeline_mode = #tpu.pipeline_mode<synchronous>, transform_indices = @transform_1, window_bounds = array<i64: 16, 128>}, {transform_indices = @transform_2, window_bounds = array<i64: 1, 1>}]} {
    %c0 = arith.constant 0 : index
    %c0_0 = arith.constant 0 : index
    %0 = vector.load %arg1[%c0, %c0_0] : memref<16x128xf32, #tpu.memory_space<vmem>>, vector<16x128xf32>
    %c0_1 = arith.constant 0 : index
    %c0_2 = arith.constant 0 : index
    %1 = vector.load %arg2[%c0_1, %c0_2] : memref<16x128xf32, #tpu.memory_space<vmem>>, vector<16x128xf32>
    %2 = math.log %1 : vector<16x128xf32>
    %3 = arith.mulf %0, %2 : vector<16x128xf32>
    %4 = vector.shape_cast %3 : vector<16x128xf32> to vector<1x16x128xf32>
    %cst = arith.constant dense<0.000000e+00> : vector<1xf32>
    %5 = vector.multi_reduction <add>, %4, %cst [1, 2] : vector<1x16x128xf32> to vector<1xf32>
    %6 = vector.shape_cast %5 : vector<1xf32> to vector<1x1x1xf32>
    %7 = vector.extract %6[0, 0, 0] : f32 from vector<1x1x1xf32>
    %c0_3 = arith.constant 0 : index
    %c0_4 = arith.constant 0 : index
    %8 = memref.load %arg3[%c0_3, %c0_4] : memref<1x1xf32, #tpu.memory_space<smem>>
    memref.store %7, %arg3[%c0_3, %c0_4] : memref<1x1xf32, #tpu.memory_space<smem>>
    return
  }
  func.func @transform_0(%arg0: i32) -> (i32, i32) {
    %c0_i32 = arith.constant 0 : i32
    %c0_i32_0 = arith.constant 0 : i32
    %c0_i32_1 = arith.constant 0 : i32
    return %c0_i32, %c0_i32_0 : i32, i32
  }
  func.func @transform_1(%arg0: i32) -> (i32, i32) {
    %c0_i32 = arith.constant 0 : i32
    %c0_i32_0 = arith.constant 0 : i32
    %c0_i32_1 = arith.constant 0 : i32
    return %c0_i32, %c0_i32_0 : i32, i32
  }
  func.func @transform_2(%arg0: i32) -> (i32, i32) {
    %c0_i32 = arith.constant 0 : i32
    %c0_i32_0 = arith.constant 0 : i32
    %c0_i32_1 = arith.constant 0 : i32
    return %c0_i32, %c0_i32_0 : i32, i32
  }
}

</mosaic_0001>

<llo_original>
// kernel: tpu_custom_call.1
$region0: #{tpu_custom_call.1}
  #allocation0 [shape = 'u32[]', space=smem, size = 0x4, offset = 0x4, fixed_abs, tag = 'smem constant byte address 0x4 - core index']
  #allocation1 [shape = 'u32[144,128]{1,0:T(1,128)}', space=vmem, size = 0x12000, scoped, tag = 'internal scratch']
  %s0 = inlined_call_operand.hbm [shape: f32[16,128], index: 0, kind: input, shape index: {}]
  %s1 = inlined_call_operand.hbm [shape: f32[16,128], index: 1, kind: input, shape index: {}]
  %s2 = inlined_call_operand.hbm [shape: f32[1,1], index: 2, kind: output, shape index: {}]
  %s3 = sld [smem:[#allocation0]]
  $region26: #{tpu_custom_call.1} parent=0
    _
  %s5 = ssub.s32 1, %s3
  %s6 = scalar_select 0, %s5, %s3
  $region1: #{tpu_custom_call.1} parent=0
    #allocation2 [shape = 'u8[8192]{0}', space=vmem, size = 0x2000, scoped, tag = 'input window, operand 0, single buffered']
    #allocation3 [shape = 's32[1]{0}', space=sflag, size = 0x4, scoped, tag = 'scoped memory for tpu_custom_call.1']
    #allocation4 [shape = 's32[1]{0}', space=sflag, size = 0x4, scoped, tag = 'scoped memory for tpu_custom_call.1']
    #allocation5 [shape = 'u8[8192]{0}', space=vmem, size = 0x2000, scoped, tag = 'input window, operand 1, single buffered']
    #allocation6 [shape = 's32[1]{0}', space=sflag, size = 0x4, scoped, tag = 'scoped memory for tpu_custom_call.1']
    #allocation7 [shape = 'u8[512]{0}', space=smem, size = 0x200, scoped, tag = 'output window, operand 0, single buffered']
    %7 = vsyncpa [#allocation3], 0
    %8 = vsyncpa [#allocation6], 0
    %9 = vsyncpa [#allocation4], 0
    // Predicated region
    $region2: #{tpu_custom_call.1} parent=1 // pred_check
      _
    $region3: #{tpu_custom_call.1} parent=1 // pred_check_branch
      %11 = sbr.rel (0) target = $region5
    $region4: #{tpu_custom_call.1} parent=1 // pred_region
      %s13 = ssub.s32 256, 256
      %14 = vsyncadd [#allocation3], %s13
      %s15 = sshll.u32 [#allocation2], 4
      %s16 = int_to_ptr.vmem [resolvable:$true] %s15
      %21 = dma.hbm_to_vmem [thread:$0]  %s0, 256, %s16, [#allocation3], 128, 128, 8
    $region5: #{tpu_custom_call.1} parent=1 // pred_fallthru
      _
    // Predicated region
    $region6: #{tpu_custom_call.1} parent=1 // pred_check
      _
    $region7: #{tpu_custom_call.1} parent=1 // pred_check_branch
      %23 = sbr.rel (0) target = $region9
    $region8: #{tpu_custom_call.1} parent=1 // pred_region
      %s25 = ssub.s32 256, 256
      %26 = vsyncadd [#allocation6], %s25
      %s27 = sshll.u32 [#allocation5], 4
      %s28 = int_to_ptr.vmem [resolvable:$true] %s27
      %33 = dma.hbm_to_vmem [thread:$0]  %s1, 256, %s28, [#allocation6], 128, 128, 8
    $region9: #{tpu_custom_call.1} parent=1 // pred_fallthru
      _
    // Predicated region
    $region10: #{tpu_custom_call.1} parent=1 // pred_check
      _
    $region11: #{tpu_custom_call.1} parent=1 // pred_check_branch
      %35 = sbr.rel (0) target = $region13
    $region12: #{tpu_custom_call.1} parent=1 // pred_region
      %36 = dma.done [#allocation3], 256
    $region13: #{tpu_custom_call.1} parent=1 // pred_fallthru
      _
    // Predicated region
    $region14: #{tpu_custom_call.1} parent=1 // pred_check
      _
    $region15: #{tpu_custom_call.1} parent=1 // pred_check_branch
      %38 = sbr.rel (0) target = $region17
    $region16: #{tpu_custom_call.1} parent=1 // pred_region
      %39 = dma.done [#allocation6], 256
    $region17: #{tpu_custom_call.1} parent=1 // pred_fallthru
      _
    %v40 = vld [vmem:[#allocation2] sm:$0xff]
    %v41 = vld [vmem:[#allocation2 + $0x8] sm:$0xff]
    %v42 = vld [vmem:[#allocation5] sm:$0xff]
    %v43 = vld [vmem:[#allocation5 + $0x8] sm:$0xff]
    %v44 = vlog2.pop %v42
    %v45 = vmul.f32 %v44, 0.6931472
    %v46 = vlog2.pop %v43
    %v47 = vmul.f32 %v46, 0.6931472
    %v48 = vmul.f32 %v40, %v45
    %v49 = vmul.f32 %v41, %v47
    %v50 = vadd.f32 %v48, %v49
    %51 = vadd.xlane.f32.xlu0 %v50
    %v52 = vpop.xlane.xlu0 %51
    %v53 = vrot.slane %v52, 4
    %v54 = vadd.f32 %v52, %v53
    %v55 = vrot.slane %v54, 2
    %v56 = vadd.f32 %v54, %v55
    %v57 = vrot.slane %v56, 1
    %v58 = vadd.f32 %v56, %v57
    %s59 = vtos %v58
    %s60 = scalar_lea.smem [#allocation7], 0
    %61 = sst [smem:[%s60]] %s59
    // Predicated region
    $region18: #{tpu_custom_call.1} parent=1 // pred_check
      _
    $region19: #{tpu_custom_call.1} parent=1 // pred_check_branch
      %63 = sbr.rel (0) target = $region21
    $region20: #{tpu_custom_call.1} parent=1 // pred_region
      %s65 = ssub.s32 16, 16
      %66 = vsyncadd [#allocation4], %s65
      %69 = dma.smem_to_hbm [#allocation7], 16, %s2, [#allocation4]
    $region21: #{tpu_custom_call.1} parent=1 // pred_fallthru
      _
    // Predicated region
    $region22: #{tpu_custom_call.1} parent=1 // pred_check
      _
    $region23: #{tpu_custom_call.1} parent=1 // pred_check_branch
      %71 = sbr.rel (0) target = $region25
    $region24: #{tpu_custom_call.1} parent=1 // pred_region
      %72 = dma.done [#allocation4], 16
    $region25: #{tpu_custom_call.1} parent=1 // pred_fallthru
      _
    %73 = sfence
    %74 = vsyncpa [#allocation3], 1
    %75 = vsyncpa [#allocation6], 1
    %76 = vsyncpa [#allocation4], 1

</llo_original>
